<compile_context>
chip_gen: v5e
topology: v5e:2x2
jax: 0.10.0
libtpu: 0.0.40
codegen_flags: <defaults>
</compile_context>

<pallas_src>
import functools

import jax
import jax.numpy as jnp
from jax.experimental import pallas as pl
from jax.experimental.pallas import tpu as pltpu


def _focal_loss_kernel(x_ref, t_ref, o_ref, *, C, gamma, alpha, hw,
                       tile_s, n_inner, n_chunks):
    ci = pl.program_id(1)          # chunk index   ("parallel")
    j = pl.program_id(2)           # inner HW-tile ("arbitrary", reduction)

    @pl.when(j == 0)
    def _():
        o_ref[...] = jnp.zeros_like(o_ref)

    t = t_ref[0]                                   # (TILE_S, 128) int32
    x = x_ref[0].astype(jnp.float32)               # (C, TILE_S, 128)

    # Class max — leading-axis reduce == elementwise VPU max over dense vregs.
    m = x[0]
    for c in range(1, C):
        m = jnp.maximum(m, x[c])

    # Single pass over classes: softmax denominator + one-hot gathers.
    e_sum = None
    z_t = None
    e_t = None
    at = None
    for c in range(C):
        z_c = x[c] - m
        e_c = jnp.exp(z_c)
        sel = t == c
        if c == 0:
            e_sum = e_c
            z_t = jnp.where(sel, z_c, 0.0)
            e_t = jnp.where(sel, e_c, 0.0)
            if alpha is not None:
                at = jnp.where(sel, alpha[0], 0.0)
        else:
            e_sum = e_sum + e_c
            z_t = jnp.where(sel, z_c, z_t)
            e_t = jnp.where(sel, e_c, e_t)
            if alpha is not None:
                at = jnp.where(sel, alpha[c], at)

    logpt = z_t - jnp.log(e_sum)                   # (TILE_S, 128)
    pt = e_t / e_sum                               # == exp(logpt), no extra exp

    if alpha is not None:
        logpt = logpt * at

    # Focal factor (1 - pt) ** gamma, special-cased to stay off the EUP.
    g = float(gamma)
    if g == 0.0:
        loss = -logpt
    else:
        omp = 1.0 - pt
        if g.is_integer() and 0.0 < g <= 16.0:
            f = omp
            for _ in range(int(g) - 1):
                f = f * omp
        else:
            # Non-integer gamma: guard pow at omp == 0 (exp(g*log(0)) hazard).
            omp = jnp.maximum(omp, 0.0)
            f = jnp.where(omp > 0.0, jnp.power(jnp.maximum(omp, 1e-30), g), 0.0)
        loss = -f * logpt                          # (TILE_S, 128)

    ragged = (hw % (tile_s * 128)) != 0
    if ragged:
        is_last = jnp.logical_and(ci == n_chunks - 1, j == n_inner - 1)

        @pl.when(jnp.logical_not(is_last))
        def _():
            o_ref[0, 0] += loss

        @pl.when(is_last)
        def _():
            # Mask padded / out-of-range pixels (select, never multiply:
            # padded lanes may hold Inf/NaN intermediates).
            g_tile = ci * n_inner + j
            row = jax.lax.broadcasted_iota(jnp.int32, loss.shape, 0)
            lane = jax.lax.broadcasted_iota(jnp.int32, loss.shape, 1)
            pix = (g_tile * tile_s + row) * 128 + lane
            o_ref[0, 0] += jnp.where(pix < hw, loss, 0.0)
    else:
        o_ref[0, 0] += loss


def _pick_tile_s(S, C, itemsize, target_bytes=2 << 20, max_rows=2048):
    """Sublane-row tile targeting ~2 MiB of logits per block (multiple of 8)."""
    rows = target_bytes // max(1, C * 128 * itemsize)
    rows = min(max_rows, max(8, (rows // 8) * 8))
    if rows >= S:
        return int(S)                 # full axis -> no (8,128) constraint issue
    return int(rows)


def focal_loss(logits_nchw, target_nhw, *, gamma=0.0, alpha=None,
               size_average=True, tile_s=None):
    """Focal loss matching the PyTorch FocalLoss.forward semantics.

    logits_nchw: (N, C, H, W) float (f32 or bf16)
    target_nhw:  (N, H, W) integer class indices in [0, C)
    """
    N, C, H, W = logits_nchw.shape
    HW = H * W
    M = N * HW

    HW_pad = ((HW + 127) // 128) * 128
    S = HW_pad // 128

    # Free views (no transpose): pixels tiled onto (sublane, lane).
    x = logits_nchw.reshape(N, C, HW)
    t = target_nhw.reshape(N, HW).astype(jnp.int32)
    if HW_pad != HW:
        # One extra HBM pass only when H*W is not a multiple of 128.
        x = jnp.pad(x, ((0, 0), (0, 0), (0, HW_pad - HW)))
        t = jnp.pad(t, ((0, 0), (0, HW_pad - HW)))
    x = x.reshape(N, C, S, 128)
    t = t.reshape(N, S, 128)

    # alpha is a constructor-time constant in the PyTorch module -> bake it in
    # as static per-class scalars (None skips the gather entirely).
    if alpha is None:
        alpha_t = None
    elif isinstance(alpha, (float, int)) and not isinstance(alpha, bool):
        # PyTorch builds [alpha, 1-alpha]; only valid for C == 2.
        assert C == 2, "scalar alpha builds [alpha, 1-alpha]; requires C == 2"
        alpha_t = (float(alpha), 1.0 - float(alpha))
    else:
        alpha_t = tuple(float(a) for a in alpha)
        assert len(alpha_t) == C

    if tile_s is None:
        tile_s = _pick_tile_s(S, C, jnp.dtype(logits_nchw.dtype).itemsize)
    tile_s = int(tile_s)

    n_s_tiles = pl.cdiv(S, tile_s)
    # Split the HW-tile axis into 2 "parallel" chunks (v7x megacore) when it
    # divides evenly; otherwise keep a single chunk.
    n_chunks = 2 if (n_s_tiles >= 2 and n_s_tiles % 2 == 0) else 1
    n_inner = n_s_tiles // n_chunks

    kernel = functools.partial(
        _focal_loss_kernel, C=C, gamma=float(gamma), alpha=alpha_t, hw=HW,
        tile_s=tile_s, n_inner=n_inner, n_chunks=n_chunks)

    partials = pl.pallas_call(
        kernel,
        out_shape=jax.ShapeDtypeStruct((N, n_chunks, tile_s, 128), jnp.float32),
        grid_spec=pltpu.PrefetchScalarGridSpec(
            num_scalar_prefetch=0,
            grid=(N, n_chunks, n_inner),
            in_specs=[
                pl.BlockSpec((1, C, tile_s, 128),
                             lambda n, c, j: (n, 0, c * n_inner + j, 0)),
                pl.BlockSpec((1, tile_s, 128),
                             lambda n, c, j: (n, c * n_inner + j, 0)),
            ],
            out_specs=pl.BlockSpec((1, 1, tile_s, 128),
                                   lambda n, c, j: (n, c, 0, 0)),
        ),
        compiler_params=pltpu.CompilerParams(
            dimension_semantics=("parallel", "parallel", "arbitrary"),
            vmem_limit_bytes=32 * 1024 * 1024),
    )(x, t)

    loss_sum = jnp.sum(partials, dtype=jnp.float32)
    if size_average:
        return loss_sum / jnp.float32(M)
    return loss_sum


def _focal_loss_ref(logits_nchw, target_nhw, gamma, alpha, size_average):
    N, C, H, W = logits_nchw.shape
    x = jnp.transpose(logits_nchw, (0, 2, 3, 1)).reshape(-1, C).astype(jnp.float32)
    t = target_nhw.reshape(-1).astype(jnp.int32)
    logsm = jax.nn.log_softmax(x, axis=1)
    logpt = jnp.take_along_axis(logsm, t[:, None], axis=1)[:, 0]
    pt = jnp.exp(logpt)
    if alpha is not None:
        at = jnp.asarray(alpha, jnp.float32)[t]
        logpt = logpt * at
    loss = -1.0 * (1.0 - pt) ** gamma * logpt
    return loss.mean() if size_average else loss.sum()


if __name__ == "__main__":
    key = jax.random.PRNGKey(0)
    k1, k2, k3, k4, k5, k6 = jax.random.split(key, 6)

    # Case 1: NCHW logits, list alpha, integer gamma, mean reduction.
    N, C, H, W = 2, 4, 16, 16
    logits = jax.random.normal(k1, (N, C, H, W), jnp.float32)
    target = jax.random.randint(k2, (N, H, W), 0, C, jnp.int32)
    alpha = [0.25, 0.75, 0.5, 0.5]
    out = jax.block_until_ready(
        focal_loss(logits, target, gamma=2.0, alpha=alpha, size_average=True))
    ref = _focal_loss_ref(logits, target, 2.0, alpha, True)
    assert jnp.allclose(out, ref, rtol=1e-4, atol=1e-6), (out, ref)

    # Case 2: ragged H*W (400 -> padded to 512), gamma=0, no alpha, sum.
    N2, C2, H2, W2 = 2, 3, 20, 20
    logits2 = jax.random.normal(k3, (N2, C2, H2, W2), jnp.float32)
    target2 = jax.random.randint(k4, (N2, H2, W2), 0, C2, jnp.int32)
    out2 = jax.block_until_ready(
        focal_loss(logits2, target2, gamma=0.0, alpha=None, size_average=False))
    ref2 = _focal_loss_ref(logits2, target2, 0.0, None, False)
    assert jnp.allclose(out2, ref2, rtol=1e-4, atol=1e-4), (out2, ref2)

    # Case 3: N=1 (exercises the 2-chunk parallel HW split + accumulation),
    # scalar alpha -> [a, 1-a], non-integer gamma.
    N3, C3, H3, W3 = 1, 2, 64, 64
    logits3 = jax.random.normal(k5, (N3, C3, H3, W3), jnp.float32)
    target3 = jax.random.randint(k6, (N3, H3, W3), 0, C3, jnp.int32)
    out3 = jax.block_until_ready(
        focal_loss(logits3, target3, gamma=1.5, alpha=0.25,
                   size_average=True, tile_s=8))
    ref3 = _focal_loss_ref(logits3, target3, 1.5, [0.25, 0.75], True)
    assert jnp.allclose(out3, ref3, rtol=1e-4, atol=1e-6), (out3, ref3)

    print("KERNEL_OK")
</pallas_src>

<mosaic_0001>
module attributes {stable_mosaic.version = 11 : i64} {
  func.func @_focal_loss_kernel(%arg0: i32, %arg1: i32, %arg2: i32, %arg3: memref<1x4x2x128xf32, #tpu.memory_space<vmem>>, %arg4: memref<1x2x128xi32, #tpu.memory_space<vmem>>, %arg5: memref<1x1x2x128xf32, #tpu.memory_space<vmem>>) attributes {dimension_semantics = [#tpu.dimension_semantics<parallel>, #tpu.dimension_semantics<parallel>, #tpu.dimension_semantics<arbitrary>], iteration_bounds = array<i64: 2, 1, 1>, scalar_prefetch = 0 : i64, scratch_operands = 0 : i64, tpu.core_type = #tpu.core_type<tc>, window_params = [{transform_indices = @transform_0, window_bounds = array<i64: 1, 4, 2, 128>}, {transform_indices = @transform_1, window_bounds = array<i64: 1, 2, 128>}, {transform_indices = @transform_2, window_bounds = array<i64: 1, 1, 2, 128>}]} {
    %c0_i32 = arith.constant 0 : i32
    %0 = arith.cmpi eq, %arg2, %c0_i32 : i32
    %1 = arith.extui %0 : i1 to i32
    %c0_i32_0 = arith.constant 0 : i32
    %2 = arith.cmpi ne, %1, %c0_i32_0 : i32
    scf.if %2 {
      %cst_24 = arith.constant 0.000000e+00 : f32
      %80 = vector.broadcast %cst_24 : f32 to vector<1x1x2x128xf32>
      %c0_25 = arith.constant 0 : index
      %c0_26 = arith.constant 0 : index
      %c0_27 = arith.constant 0 : index
      %c0_28 = arith.constant 0 : index
      %81 = vector.load %arg5[%c0_25, %c0_26, %c0_27, %c0_28] : memref<1x1x2x128xf32, #tpu.memory_space<vmem>>, vector<1x1x2x128xf32>
      tpu.vector_store %arg5[%c0_25, %c0_26, %c0_27, %c0_28], %80 {strides = array<i32>} : memref<1x1x2x128xf32, #tpu.memory_space<vmem>>, vector<1x1x2x128xf32>,
    } else {
    }
    %c0 = arith.constant 0 : index
    %c0_1 = arith.constant 0 : index
    %c0_2 = arith.constant 0 : index
    %3 = vector.load %arg4[%c0, %c0_1, %c0_2] : memref<1x2x128xi32, #tpu.memory_space<vmem>>, vector<1x2x128xi32>
    %4 = vector.shape_cast %3 : vector<1x2x128xi32> to vector<2x128xi32>
    %c0_3 = arith.constant 0 : index
    %c0_4 = arith.constant 0 : index
    %c0_5 = arith.constant 0 : index
    %c0_6 = arith.constant 0 : index
    %5 = vector.load %arg3[%c0_3, %c0_4, %c0_5, %c0_6] : memref<1x4x2x128xf32, #tpu.memory_space<vmem>>, vector<1x4x2x128xf32>
    %6 = vector.shape_cast %5 : vector<1x4x2x128xf32> to vector<4x2x128xf32>
    %7 = vector.extract_strided_slice %6 {offsets = [0, 0, 0], sizes = [1, 2, 128], strides = [1, 1, 1]} : vector<4x2x128xf32> to vector<1x2x128xf32>
    %8 = vector.shape_cast %7 : vector<1x2x128xf32> to vector<2x128xf32>
    %9 = vector.extract_strided_slice %6 {offsets = [1, 0, 0], sizes = [1, 2, 128], strides = [1, 1, 1]} : vector<4x2x128xf32> to vector<1x2x128xf32>
    %10 = vector.shape_cast %9 : vector<1x2x128xf32> to vector<2x128xf32>
    %11 = arith.maximumf %8, %10 : vector<2x128xf32>
    %12 = vector.extract_strided_slice %6 {offsets = [2, 0, 0], sizes = [1, 2, 128], strides = [1, 1, 1]} : vector<4x2x128xf32> to vector<1x2x128xf32>
    %13 = vector.shape_cast %12 : vector<1x2x128xf32> to vector<2x128xf32>
    %14 = arith.maximumf %11, %13 : vector<2x128xf32>
    %15 = vector.extract_strided_slice %6 {offsets = [3, 0, 0], sizes = [1, 2, 128], strides = [1, 1, 1]} : vector<4x2x128xf32> to vector<1x2x128xf32>
    %16 = vector.shape_cast %15 : vector<1x2x128xf32> to vector<2x128xf32>
    %17 = arith.maximumf %14, %16 : vector<2x128xf32>
    %18 = vector.extract_strided_slice %6 {offsets = [0, 0, 0], sizes = [1, 2, 128], strides = [1, 1, 1]} : vector<4x2x128xf32> to vector<1x2x128xf32>
    %19 = vector.shape_cast %18 : vector<1x2x128xf32> to vector<2x128xf32>
    %20 = arith.subf %19, %17 : vector<2x128xf32>
    %21 = math.exp %20 : vector<2x128xf32>
    %c0_i32_7 = arith.constant 0 : i32
    %22 = vector.broadcast %c0_i32_7 : i32 to vector<2x128xi32>
    %23 = arith.cmpi eq, %4, %22 : vector<2x128xi32>
    %cst = arith.constant 0.000000e+00 : f32
    %24 = vector.broadcast %cst : f32 to vector<2x128xf32>
    %25 = arith.select %23, %20, %24 : vector<2x128xi1>, vector<2x128xf32>
    %cst_8 = arith.constant 0.000000e+00 : f32
    %26 = vector.broadcast %cst_8 : f32 to vector<2x128xf32>
    %27 = arith.select %23, %21, %26 : vector<2x128xi1>, vector<2x128xf32>
    %cst_9 = arith.constant 2.500000e-01 : f32
    %cst_10 = arith.constant 0.000000e+00 : f32
    %28 = vector.broadcast %cst_9 : f32 to vector<2x128xf32>
    %29 = vector.broadcast %cst_10 : f32 to vector<2x128xf32>
    %30 = arith.select %23, %28, %29 : vector<2x128xi1>, vector<2x128xf32>
    %31 = vector.extract_strided_slice %6 {offsets = [1, 0, 0], sizes = [1, 2, 128], strides = [1, 1, 1]} : vector<4x2x128xf32> to vector<1x2x128xf32>
    %32 = vector.shape_cast %31 : vector<1x2x128xf32> to vector<2x128xf32>
    %33 = arith.subf %32, %17 : vector<2x128xf32>
    %34 = math.exp %33 : vector<2x128xf32>
    %c1_i32 = arith.constant 1 : i32
    %35 = vector.broadcast %c1_i32 : i32 to vector<2x128xi32>
    %36 = arith.cmpi eq, %4, %35 : vector<2x128xi32>
    %37 = arith.addf %21, %34 : vector<2x128xf32>
    %38 = arith.select %36, %33, %25 : vector<2x128xi1>, vector<2x128xf32>
    %39 = arith.select %36, %34, %27 : vector<2x128xi1>, vector<2x128xf32>
    %cst_11 = arith.constant 7.500000e-01 : f32
    %40 = vector.broadcast %cst_11 : f32 to vector<2x128xf32>
    %41 = arith.select %36, %40, %30 : vector<2x128xi1>, vector<2x128xf32>
    %42 = vector.extract_strided_slice %6 {offsets = [2, 0, 0], sizes = [1, 2, 128], strides = [1, 1, 1]} : vector<4x2x128xf32> to vector<1x2x128xf32>
    %43 = vector.shape_cast %42 : vector<1x2x128xf32> to vector<2x128xf32>
    %44 = arith.subf %43, %17 : vector<2x128xf32>
    %45 = math.exp %44 : vector<2x128xf32>
    %c2_i32 = arith.constant 2 : i32
    %46 = vector.broadcast %c2_i32 : i32 to vector<2x128xi32>
    %47 = arith.cmpi eq, %4, %46 : vector<2x128xi32>
    %48 = arith.addf %37, %45 : vector<2x128xf32>
    %49 = arith.select %47, %44, %38 : vector<2x128xi1>, vector<2x128xf32>
    %50 = arith.select %47, %45, %39 : vector<2x128xi1>, vector<2x128xf32>
    %cst_12 = arith.constant 5.000000e-01 : f32
    %51 = vector.broadcast %cst_12 : f32 to vector<2x128xf32>
    %52 = arith.select %47, %51, %41 : vector<2x128xi1>, vector<2x128xf32>
    %53 = vector.extract_strided_slice %6 {offsets = [3, 0, 0], sizes = [1, 2, 128], strides = [1, 1, 1]} : vector<4x2x128xf32> to vector<1x2x128xf32>
    %54 = vector.shape_cast %53 : vector<1x2x128xf32> to vector<2x128xf32>
    %55 = arith.subf %54, %17 : vector<2x128xf32>
    %56 = math.exp %55 : vector<2x128xf32>
    %c3_i32 = arith.constant 3 : i32
    %57 = vector.broadcast %c3_i32 : i32 to vector<2x128xi32>
    %58 = arith.cmpi eq, %4, %57 : vector<2x128xi32>
    %59 = arith.addf %48, %56 : vector<2x128xf32>
    %60 = arith.select %58, %55, %49 : vector<2x128xi1>, vector<2x128xf32>
    %61 = arith.select %58, %56, %50 : vector<2x128xi1>, vector<2x128xf32>
    %cst_13 = arith.constant 5.000000e-01 : f32
    %62 = vector.broadcast %cst_13 : f32 to vector<2x128xf32>
    %63 = arith.select %58, %62, %52 : vector<2x128xi1>, vector<2x128xf32>
    %64 = math.log %59 : vector<2x128xf32>
    %65 = arith.subf %60, %64 : vector<2x128xf32>
    %66 = arith.divf %61, %59 : vector<2x128xf32>
    %67 = arith.mulf %65, %63 : vector<2x128xf32>
    %cst_14 = arith.constant 1.000000e+00 : f32
    %68 = vector.broadcast %cst_14 : f32 to vector<2x128xf32>
    %69 = arith.subf %68, %66 : vector<2x128xf32>
    %70 = arith.mulf %69, %69 : vector<2x128xf32>
    %cst_15 = arith.constant 0.000000e+00 : f32
    %71 = vector.broadcast %cst_15 : f32 to vector<2x128xf32>
    %72 = arith.subf %71, %70 : vector<2x128xf32>
    %73 = arith.mulf %72, %67 : vector<2x128xf32>
    %c0_16 = arith.constant 0 : index
    %c0_17 = arith.constant 0 : index
    %c0_18 = arith.constant 0 : index
    %c0_19 = arith.constant 0 : index
    %74 = vector.load %arg5[%c0_16, %c0_17, %c0_18, %c0_19] : memref<1x1x2x128xf32, #tpu.memory_space<vmem>>, vector<1x1x2x128xf32>
    %75 = vector.shape_cast %74 : vector<1x1x2x128xf32> to vector<2x128xf32>
    %76 = arith.addf %75, %73 : vector<2x128xf32>
    %c0_20 = arith.constant 0 : index
    %c0_21 = arith.constant 0 : index
    %c0_22 = arith.constant 0 : index
    %c0_23 = arith.constant 0 : index
    %77 = vector.load %arg5[%c0_20, %c0_21, %c0_22, %c0_23] : memref<1x1x2x128xf32, #tpu.memory_space<vmem>>, vector<1x1x2x128xf32>
    %78 = vector.shape_cast %77 : vector<1x1x2x128xf32> to vector<2x128xf32>
    %79 = vector.shape_cast %76 : vector<2x128xf32> to vector<1x1x2x128xf32>
    tpu.vector_store %arg5[%c0_20, %c0_21, %c0_22, %c0_23], %79 {strides = array<i32>} : memref<1x1x2x128xf32, #tpu.memory_space<vmem>>, vector<1x1x2x128xf32>,
    return
  }
  func.func @transform_0(%arg0: i32, %arg1: i32, %arg2: i32) -> (i32, i32, i32, i32) {
    %c1_i32 = arith.constant 1 : i32
    %0 = arith.muli %arg1, %c1_i32 : i32
    %1 = arith.addi %0, %arg2 : i32
    %c0_i32 = arith.constant 0 : i32
    %c0_i32_0 = arith.constant 0 : i32
    %c0_i32_1 = arith.constant 0 : i32
    return %arg0, %c0_i32, %1, %c0_i32_0 : i32, i32, i32, i32
  }
  func.func @transform_1(%arg0: i32, %arg1: i32, %arg2: i32) -> (i32, i32, i32) {
    %c1_i32 = arith.constant 1 : i32
    %0 = arith.muli %arg1, %c1_i32 : i32
    %1 = arith.addi %0, %arg2 : i32
    %c0_i32 = arith.constant 0 : i32
    %c0_i32_0 = arith.constant 0 : i32
    return %arg0, %1, %c0_i32 : i32, i32, i32
  }
  func.func @transform_2(%arg0: i32, %arg1: i32, %arg2: i32) -> (i32, i32, i32, i32) {
    %c0_i32 = arith.constant 0 : i32
    %c0_i32_0 = arith.constant 0 : i32
    %c0_i32_1 = arith.constant 0 : i32
    return %arg0, %arg1, %c0_i32, %c0_i32_0 : i32, i32, i32, i32
  }
}

</mosaic_0001>

<llo_original>
// kernel: tpu_custom_call.1
$region0: #{tpu_custom_call.1}
  #allocation0 [shape = 'u32[]', space=smem, size = 0x4, offset = 0x4, fixed_abs, tag = 'smem constant byte address 0x4 - core index']
  #allocation1 [shape = 'u32[72,128]{1,0:T(1,128)}', space=vmem, size = 0x9000, scoped, tag = 'internal scratch']
  %s0 = inlined_call_operand.hbm [shape: f32[2,4,2,128], index: 0, kind: input, shape index: {}]
  %s1 = inlined_call_operand.hbm [shape: s32[2,2,128], index: 1, kind: input, shape index: {}]
  %s2 = inlined_call_operand.hbm [shape: f32[2,1,2,128], index: 2, kind: output, shape index: {}]
  %s3 = sld [smem:[#allocation0]]
  $region53: #{tpu_custom_call.1} parent=0
    _
  %s5 = ssub.s32 1, %s3
  %s6 = scalar_select 0, %s5, %s3
  $region1: #{tpu_custom_call.1} parent=0
    #allocation2 [shape = 'u8[8192]{0}', space=vmem, size = 0x2000, scoped, tag = 'input window, operand 0']
    #allocation3 [shape = 's32[2]{0}', space=sflag, size = 0x8, scoped, tag = 'scoped memory for tpu_custom_call.1']
    #allocation4 [shape = 's32[2]{0}', space=sflag, size = 0x8, scoped, tag = 'scoped memory for tpu_custom_call.1']
    #allocation5 [shape = 'u8[2048]{0}', space=vmem, size = 0x800, scoped, tag = 'input window, operand 1']
    #allocation6 [shape = 's32[2]{0}', space=sflag, size = 0x8, scoped, tag = 'scoped memory for tpu_custom_call.1']
    #allocation7 [shape = 'u8[2048]{0}', space=vmem, size = 0x800, scoped, tag = 'output window, operand 0']
    %7 = vsyncpa [#allocation3], 0
    %s8 = scalar_lea.sflag [#allocation3], 1
    %9 = vsyncpa %s8, 0
    %10 = vsyncpa [#allocation6], 0
    %s11 = scalar_lea.sflag [#allocation6], 1
    %12 = vsyncpa %s11, 0
    %13 = vsyncpa [#allocation4], 0
    %s14 = scalar_lea.sflag [#allocation4], 1
    %15 = vsyncpa %s14, 0
    loop: start=0, step=1, limit=4
    $region2: #{tpu_custom_call.1} parent=1 // loop_pre_header
      _
    $region3: #{tpu_custom_call.1} parent=1 // loop_header
      %s17 = sphi 0, %s21
      %p18 = scmp.ge.s32.totalorder %s17, 4
      %s24 = sphi 0, %s43
      %s25 = sphi 0, %s39
      %s26 = sphi 0, %s35
      %s27 = sphi 0, %s24
      %s28 = sphi 0, %s25
      %s29 = sphi 0, %s26
      %s30 = sphi 0, %s27
      %s31 = sphi 0, %s28
      %s32 = sphi 0, %s29
      %s50 = sphi 0, %s52
      %s53 = sphi 0, %s50
      %s54 = sphi 0, %s53
      %s70 = sphi 0, %s54
      %s80 = sphi 0, %s82
      %s83 = sphi 0, %s80
      %s84 = sphi 0, %s83
      %s100 = sphi 0, %s84
      %s108 = sphi 0, %s110
      %s111 = sphi 0, %s108
      %s112 = sphi 0, %s111
      %s128 = sphi 0, %s112
    $region4: #{tpu_custom_call.1} parent=1 // loop_header_branch
      %20 = sbr.rel (%p18) target = $region8
    $region5: #{tpu_custom_call.1} parent=1 // loop_body
      %s22 = ssub.s32 %s17, 1
      %s23 = ssub.s32 %s17, 2
      %s33 = sadd.s32 1, %s26
      %p34 = scmp.ge.s32.totalorder %s33, 1
      %s35 = scalar_select %p34, 0, %s33
      %s36 = sadd.s32 1, %s25
      %s37 = scalar_select %p34, %s36, %s25
      %p38 = scmp.ge.s32.totalorder %s37, 1
      %s39 = scalar_select %p38, 0, %s37
      %s40 = sadd.s32 1, %s24
      %s41 = scalar_select %p38, %s40, %s24
      %p42 = scmp.ge.s32.totalorder %s41, 2
      %s43 = scalar_select %p42, 0, %s41
      %s44 = sadd.s32 %s25, %s26
      %s45 = sadd.s32 %s39, %s35
      %s46 = ssub.s32 %s24, %s43
      %s47 = ssub.s32 %s44, %s45
      %s48 = sor.u32 %s46, %s47
      %p49 = scmp.eq.s32.totalorder %s48, 0
      %s51 = sadd.s32 %s50, 1
      %s52 = scalar_select %p49, %s50, %s51
      %p55 = pneg %p49
      %p56 = scmp.eq.s32.totalorder %s17, 1
      %p57 = por %p55, %p56
      %p58 = scmp.ne.s32.totalorder %s50, %s53
      %p59 = scmp.eq.s32.totalorder %s17, 0
      %p60 = por %p58, %p59
      %p61 = scmp.ne.s32.totalorder %s50, %s53
      %p62 = scmp.eq.s32.totalorder %s22, 1
      %p63 = por %p61, %p62
      %p64 = scmp.ne.s32.totalorder %s53, %s54
      %p65 = scmp.eq.s32.totalorder %s22, 0
      %p66 = por %p64, %p65
      %p67 = scmp.ne.s32.totalorder %s53, %s54
      %p68 = scmp.eq.s32.totalorder %s23, 1
      %p69 = por %p67, %p68
      %p71 = scmp.ne.s32.totalorder %s54, %s70
      %p72 = scmp.eq.s32.totalorder %s23, 0
      %p73 = por %p71, %p72
      %s74 = sadd.s32 %s25, %s26
      %s75 = sadd.s32 %s39, %s35
      %s76 = ssub.s32 %s24, %s43
      %s77 = ssub.s32 %s74, %s75
      %s78 = sor.u32 %s76, %s77
      %p79 = scmp.eq.s32.totalorder %s78, 0
      %s81 = sadd.s32 %s80, 1
      %s82 = scalar_select %p79, %s80, %s81
      %p85 = pneg %p79
      %p86 = scmp.eq.s32.totalorder %s17, 1
      %p87 = por %p85, %p86
      %p88 = scmp.ne.s32.totalorder %s80, %s83
      %p89 = scmp.eq.s32.totalorder %s17, 0
      %p90 = por %p88, %p89
      %p91 = scmp.ne.s32.totalorder %s80, %s83
      %p92 = scmp.eq.s32.totalorder %s22, 1
      %p93 = por %p91, %p92
      %p94 = scmp.ne.s32.totalorder %s83, %s84
      %p95 = scmp.eq.s32.totalorder %s22, 0
      %p96 = por %p94, %p95
      %p97 = scmp.ne.s32.totalorder %s83, %s84
      %p98 = scmp.eq.s32.totalorder %s23, 1
      %p99 = por %p97, %p98
      %p101 = scmp.ne.s32.totalorder %s84, %s100
      %p102 = scmp.eq.s32.totalorder %s23, 0
      %p103 = por %p101, %p102
      %s104 = ssub.s32 %s24, %s43
      %s105 = ssub.s32 %s25, %s39
      %s106 = sor.u32 %s104, %s105
      %p107 = scmp.eq.s32.totalorder %s106, 0
      %s109 = sadd.s32 %s108, 1
      %s110 = scalar_select %p107, %s108, %s109
      %p113 = pneg %p107
      %p114 = scmp.eq.s32.totalorder %s17, 1
      %p115 = por %p113, %p114
      %p116 = scmp.ne.s32.totalorder %s108, %s111
      %p117 = scmp.eq.s32.totalorder %s17, 0
      %p118 = por %p116, %p117
      %p119 = scmp.ne.s32.totalorder %s108, %s111
      %p120 = scmp.eq.s32.totalorder %s22, 1
      %p121 = por %p119, %p120
      %p122 = scmp.ne.s32.totalorder %s111, %s112
      %p123 = scmp.eq.s32.totalorder %s22, 0
      %p124 = por %p122, %p123
      %p125 = scmp.ne.s32.totalorder %s111, %s112
      %p126 = scmp.eq.s32.totalorder %s23, 1
      %p127 = por %p125, %p126
      %p129 = scmp.ne.s32.totalorder %s112, %s128
      %p130 = scmp.eq.s32.totalorder %s23, 0
      %p131 = por %p129, %p130
      %p132 = scmp.le.s32.totalorder 1, %s17
      %p133 = scmp.lt.s32.totalorder %s17, 3
      %p134 = pnand %p132, %p133
      %p135 = pneg %p134
      // Predicated region
      $region9: #{tpu_custom_call.1} parent=5 // pred_check
        _
      $region10: #{tpu_custom_call.1} parent=5 // pred_check_branch
        %137 = sbr.rel (%p134) target = $region12
      $region11: #{tpu_custom_call.1} parent=5 // pred_region
        %s138 = ssub.s32 %s17, 1
      $region12: #{tpu_custom_call.1} parent=5 // pred_fallthru
        _
      %p139 = scmp.lt.s32.totalorder %s17, 2
      // Predicated region
      $region13: #{tpu_custom_call.1} parent=5 // pred_check
        %p140 = pneg %p139
      $region14: #{tpu_custom_call.1} parent=5 // pred_check_branch
        %142 = sbr.rel (%p140) target = $region16
      $region15: #{tpu_custom_call.1} parent=5 // pred_region
        // Predicated region
        $region17: #{tpu_custom_call.1} parent=15 // pred_check
          %p143 = pneg %p60
        $region18: #{tpu_custom_call.1} parent=15 // pred_check_branch
          %145 = sbr.rel (%p143) target = $region20
        $region19: #{tpu_custom_call.1} parent=15 // pred_region
          %s146 = sand.u32 %s50, 1
          %s147 = scalar_lea.sflag [#allocation3], %s146
          %s148 = sand.u32 %s50, 1
          %s149 = smul.addr %s148, 8
          %s150 = scalar_lea.vmem [#allocation2], %s149
          %s151 = sadd.s32 %s25, %s26
          %153 = vsyncadd %s147, 0
          %s154 = smul.addr %s24, 4
          %s155 = sadd.s32 %s151, %s154
          %s156 = smul.addr %s155, 2
          %s157 = scalar_lea.hbm %s0, %s156
          %s158 = sshll.u32 %s157, 4
          %s159 = int_to_ptr.hbm [resolvable:$true] %s158
          %s160 = sshll.u32 %s150, 4
          %s161 = int_to_ptr.vmem [resolvable:$true] %s160
          %166 = dma.hbm_to_vmem [thread:$0]  %s159, 128, %s161, %s147, 32, 32, 2
        $region20: #{tpu_custom_call.1} parent=15 // pred_fallthru
          _
        // Predicated region
        $region21: #{tpu_custom_call.1} parent=15 // pred_check
          %p167 = pneg %p90
        $region22: #{tpu_custom_call.1} parent=15 // pred_check_branch
          %169 = sbr.rel (%p167) target = $region24
        $region23: #{tpu_custom_call.1} parent=15 // pred_region
          %s170 = sand.u32 %s80, 1
          %s171 = scalar_lea.sflag [#allocation6], %s170
          %s172 = sand.u32 %s80, 1
          %s173 = smul.addr %s172, 2
          %s174 = scalar_lea.vmem [#allocation5], %s173
          %s175 = sadd.s32 %s25, %s26
          %177 = vsyncadd %s171, 0
          %s178 = sadd.s32 %s175, %s24
          %s179 = smul.addr %s178, 2
          %s180 = scalar_lea.hbm %s1, %s179
          %s182 = sshll.u32 %s180, 4
          %s183 = int_to_ptr.hbm [resolvable:$true] %s182
          %s184 = sshll.u32 %s174, 4
          %s185 = int_to_ptr.vmem [resolvable:$true] %s184
          %187 = dma.hbm_to_vmem [thread:$0]  %s183, 32, %s185, %s171
        $region24: #{tpu_custom_call.1} parent=15 // pred_fallthru
          _
      $region16: #{tpu_custom_call.1} parent=5 // pred_fallthru
        _
      %p188 = scmp.le.s32.totalorder 1, %s17
      %p189 = scmp.lt.s32.totalorder %s17, 3
      %p190 = pnand %p188, %p189
      %p191 = pneg %p190
      // Predicated region
      $region25: #{tpu_custom_call.1} parent=5 // pred_check
        _
      $region26: #{tpu_custom_call.1} parent=5 // pred_check_branch
        %193 = sbr.rel (%p190) target = $region28
      $region27: #{tpu_custom_call.1} parent=5 // pred_region
        %s194 = ssub.s32 %s17, 1
        %s195 = sand.u32 %s53, 1
        %s196 = scalar_lea.sflag [#allocation3], %s195
        %s197 = sand.u32 %s53, 1
        %s198 = smul.addr %s197, 8
        %s199 = scalar_lea.vmem [#allocation2], %s198
        // Predicated region
        $region29: #{tpu_custom_call.1} parent=27 // pred_check
          %p200 = pneg %p66
        $region30: #{tpu_custom_call.1} parent=27 // pred_check_branch
          %202 = sbr.rel (%p200) target = $region32
        $region31: #{tpu_custom_call.1} parent=27 // pred_region
          %204 = dma.done %s196, 128
        $region32: #{tpu_custom_call.1} parent=27 // pred_fallthru
          _
        %s205 = sand.u32 %s83, 1
        %s206 = scalar_lea.sflag [#allocation6], %s205
        %s207 = sand.u32 %s83, 1
        %s208 = smul.addr %s207, 2
        %s209 = scalar_lea.vmem [#allocation5], %s208
        // Predicated region
        $region33: #{tpu_custom_call.1} parent=27 // pred_check
          %p210 = pneg %p96
        $region34: #{tpu_custom_call.1} parent=27 // pred_check_branch
          %212 = sbr.rel (%p210) target = $region36
        $region35: #{tpu_custom_call.1} parent=27 // pred_region
          %214 = dma.done %s206, 32
        $region36: #{tpu_custom_call.1} parent=27 // pred_fallthru
          _
        %s215 = sand.u32 %s53, 1
        %s216 = scalar_lea.sflag [#allocation3], %s215
        %s217 = sand.u32 %s53, 1
        %s218 = smul.addr %s217, 8
        %s219 = scalar_lea.vmem [#allocation2], %s218
        %p220 = pneg %p66
        %p221 = pneg %p63
        %s222 = sand.u32 %s83, 1
        %s223 = scalar_lea.sflag [#allocation6], %s222
        %s224 = sand.u32 %s83, 1
        %s225 = smul.addr %s224, 2
        %s226 = scalar_lea.vmem [#allocation5], %s225
        %p227 = pneg %p96
        %p228 = pneg %p93
        %p229 = pneg %p124
        %p230 = pneg %p121
        %s231 = sand.u32 %s111, 1
        %s232 = scalar_lea.sflag [#allocation4], %s231
        %s233 = sand.u32 %s111, 1
        %s234 = smul.addr %s233, 2
        %s235 = scalar_lea.vmem [#allocation7], %s234
        %s236 = sadd.s32 %s28, %s29
        %s237 = sadd.s32 %s28, %s29
        %p238 = scmp.eq.s32.totalorder %s29, 0
        // Predicated region
        $region37: #{tpu_custom_call.1} parent=27 // pred_check
          %p239 = pneg %p238
        $region38: #{tpu_custom_call.1} parent=27 // pred_check_branch
          %241 = sbr.rel (%p239) target = $region40
        $region39: #{tpu_custom_call.1} parent=27 // pred_region
          %242 = vst [vmem:[%s235] sm:$0x3] 0.0
        $region40: #{tpu_custom_call.1} parent=27 // pred_fallthru
          _
        %v243 = vld [vmem:[%s209] sm:$0x3]
        %v244 = vld [vmem:[%s199] sm:$0x3]
        %v245 = vld [vmem:[%s199 + $0x2] sm:$0x3]
        %v246 = vld [vmem:[%s199 + $0x4] sm:$0x3]
        %v247 = vld [vmem:[%s199 + $0x6] sm:$0x3]
        %v248 = vmax.f32 %v244, %v245
        %v249 = vmax.f32 %v248, %v246
        %v250 = vmax.f32 %v249, %v247
        %v251 = vsub.f32 %v244, %v250
        %v252 = vmul.f32 %v251, 1.442695
        %v253 = vpow.pop %v252
        %vm254 = vcmp.eq.s32.totalorder %v243, 0
        %v255 = vsel %vm254, %v251, 0.0
        %v256 = vsel %vm254, %v253, 0.0
        %v257 = vsel %vm254, 0.25, 0.0
        %v258 = vsub.f32 %v245, %v250
        %v259 = vmul.f32 %v258, 1.442695
        %v260 = vpow.pop %v259
        %vm261 = vcmp.eq.s32.totalorder %v243, 1
        %v262 = vadd.f32 %v253, %v260
        %v263 = vsel %vm261, %v258, %v255
        %v264 = vsel %vm261, %v260, %v256
        %v265 = vsel %vm261, 0.75, %v257
        %v266 = vsub.f32 %v246, %v250
        %v267 = vmul.f32 %v266, 1.442695
        %v268 = vpow.pop %v267
        %vm269 = vcmp.eq.s32.totalorder %v243, 2
        %v270 = vadd.f32 %v262, %v268
        %v271 = vsel %vm269, %v266, %v263
        %v272 = vsel %vm269, %v268, %v264
        %v273 = vsel %vm269, 0.5, %v265
        %v274 = vsub.f32 %v247, %v250
        %v275 = vmul.f32 %v274, 1.442695
        %v276 = vpow.pop %v275
        %vm277 = vcmp.eq.s32.totalorder %v243, 3
        %v278 = vadd.f32 %v270, %v276
        %v279 = vsel %vm277, %v274, %v271
        %v280 = vsel %vm277, %v276, %v272
        %v281 = vsel %vm277, 0.5, %v273
        %v282 = vlog2.pop %v278
        %v283 = vmul.f32 %v282, 0.6931472
        %v284 = vsub.f32 %v279, %v283
        %v285 = vrcp.pop %v278
        %v286 = vmul.f32 %v278, %v285
        %v287 = vsub.f32 1.0, %v286
        %v288 = vmul.f32 %v285, %v287
        %v289 = vadd.f32 %v285, %v288
        %vm290 = vweird.f32 %v278
        %vm291 = vweird.f32 %v285
        %vm292 = vmor %vm290, %vm291
        %v293 = vsel %vm292, %v285, %v289
        %v294 = vand.u32 2147483647, %v278
        %vm295 = vcmp.eq.f32.partialorder %v294, 8.507059e+37
        %v296 = vand.u32 %v278, 2147483648
        %v297 = vor.u32 1.1754944e-38, %v296
        %v298 = vsel %vm295, %v297, %v293
        %v299 = vmul.f32 %v280, %v298
        %v300 = vmul.f32 %v284, %v281
        %v301 = vsub.f32 1.0, %v299
        %v302 = vmul.f32 %v301, %v301
        %v303 = vsub.f32 0.0, %v302
        %v304 = vmul.f32 %v303, %v300
        %v305 = vld [vmem:[%s235] sm:$0x3]
        %v306 = vadd.f32 %v305, %v304
        %307 = vst [vmem:[%s235] sm:$0x3] %v306
        %s308 = sand.u32 %s111, 1
        %s309 = scalar_lea.sflag [#allocation4], %s308
        %s310 = sand.u32 %s111, 1
        %s311 = smul.addr %s310, 2
        %s312 = scalar_lea.vmem [#allocation7], %s311
        // Predicated region
        $region41: #{tpu_custom_call.1} parent=27 // pred_check
          %p313 = pneg %p121
        $region42: #{tpu_custom_call.1} parent=27 // pred_check_branch
          %315 = sbr.rel (%p313) target = $region44
        $region43: #{tpu_custom_call.1} parent=27 // pred_region
          %317 = vsyncadd %s309, 0
          %s318 = sadd.s32 %s28, %s27
          %s319 = smul.addr %s318, 2
          %s320 = scalar_lea.hbm %s2, %s319
          %s322 = sshll.u32 %s312, 4
          %s323 = int_to_ptr.vmem [resolvable:$true] %s322
          %s324 = sshll.u32 %s320, 4
          %s325 = int_to_ptr.hbm [resolvable:$true] %s324
          %327 = dma.vmem_to_hbm [thread:$0]  %s323, 32, %s325, %s309
        $region44: #{tpu_custom_call.1} parent=27 // pred_fallthru
          _
      $region28: #{tpu_custom_call.1} parent=5 // pred_fallthru
        _
      %p328 = scmp.le.s32.totalorder 2, %s17
      // Predicated region
      $region45: #{tpu_custom_call.1} parent=5 // pred_check
        %p329 = pneg %p328
      $region46: #{tpu_custom_call.1} parent=5 // pred_check_branch
        %331 = sbr.rel (%p329) target = $region48
      $region47: #{tpu_custom_call.1} parent=5 // pred_region
        %s332 = ssub.s32 %s17, 2
        // Predicated region
        $region49: #{tpu_custom_call.1} parent=47 // pred_check
          %p333 = pneg %p127
        $region50: #{tpu_custom_call.1} parent=47 // pred_check_branch
          %335 = sbr.rel (%p333) target = $region52
        $region51: #{tpu_custom_call.1} parent=47 // pred_region
          %s336 = sand.u32 %s112, 1
          %s337 = scalar_lea.sflag [#allocation4], %s336
          %s338 = sand.u32 %s112, 1
          %s339 = smul.addr %s338, 2
          %s340 = scalar_lea.vmem [#allocation7], %s339
          %342 = dma.done %s337, 32
        $region52: #{tpu_custom_call.1} parent=47 // pred_fallthru
          _
      $region48: #{tpu_custom_call.1} parent=5 // pred_fallthru
        _
    $region6: #{tpu_custom_call.1} parent=1 // loop_footer
      %s21 = sadd.s32 1, %s17
    $region7: #{tpu_custom_call.1} parent=1 // loop_footer_branch
      %16 = sbr.rel target = $region3
    $region8: #{tpu_custom_call.1} parent=1 // loop_exit
      _
    %343 = vsyncpa [#allocation3], 1
    %s344 = scalar_lea.sflag [#allocation3], 1
    %345 = vsyncpa %s344, 1
    %346 = vsyncpa [#allocation6], 1
    %s347 = scalar_lea.sflag [#allocation6], 1
    %348 = vsyncpa %s347, 1
    %349 = vsyncpa [#allocation4], 1
    %s350 = scalar_lea.sflag [#allocation4], 1
    %351 = vsyncpa %s350, 1

</llo_original>
